<compile_context>
chip_gen: v7x
topology: tpu7x:2x2x1
jax: 0.10.0
libtpu: 0.0.40
codegen_flags: <defaults>
</compile_context>

<pallas_src>
import functools

import jax
import jax.numpy as jnp
from jax import lax
from jax.experimental import pallas as pl
from jax.experimental.pallas import tpu as pltpu

_IN_EPS = 1e-5      # nn.InstanceNorm2d default eps
_DROP_P = 0.5       # nn.Dropout(p=0.5)

# murmur3 fmix32 constants, written as signed int32 so jnp accepts them.
_H_M1 = -2048144789   # 0x85EBCA6B
_H_M2 = -1028477387   # 0xC2B2AE35
_PHI = -1640531527    # 0x9E3779B9


def _fmix32(h):
    """murmur3 finalizer on int32 vectors (wrapping arithmetic, logical shifts)."""
    h = h ^ lax.shift_right_logical(h, 16)
    h = h * _H_M1
    h = h ^ lax.shift_right_logical(h, 13)
    h = h * _H_M2
    h = h ^ lax.shift_right_logical(h, 16)
    return h


def _make_kernel(cin, cout_total, ct, Wh, L, M):
    """Builds the fused conv + instance-norm + ReLU + dropout kernel."""
    inv_m = 1.0 / float(M)
    drop_scale = 1.0 / (1.0 - _DROP_P)
    taps = ((0, 0), (0, 1), (1, 0), (1, 1))   # (row shift a, col shift b) of the 2x2 conv

    def kernel(seed_ref, xs_ref, w_ref, g_ref, b_ref, mask_ref, o_ref):
        # seed_ref: (1,) int32 scalar-prefetch (SMEM)
        # xs_ref:   (1, 4*Cin, Hh*Wh) bf16 pixel-unshuffled padded image (flat spatial)
        # w_ref:    (4, ct, 4*Cin)    bf16 per-tap weights
        # g_ref:    (ct, 1) f32 gamma,  b_ref: (ct, 1) f32 beta
        # mask_ref: (1, L) f32 valid-column mask (drops the Wh-stride garbage column)
        # o_ref:    (1, ct, L) output (channel-major, lane dim = flat spatial)

        # --- conv: 4 shifted channel-major matmuls, f32 accumulation ------------------
        y = None
        for t, (a, b) in enumerate(taps):
            off = a * Wh + b                                   # static python int
            rhs = xs_ref[0, :, off:off + L]                    # (4*Cin, L) bf16
            part = jnp.dot(w_ref[t], rhs, preferred_element_type=jnp.float32)
            y = part if y is None else y + part                # (ct, L) f32

        # --- instance norm (one-pass masked stats) + affine + dropout-scale fold ------
        mask = mask_ref[...]                                   # (1, L)
        ym = y * mask
        s1 = jnp.sum(ym, axis=-1, keepdims=True)               # (ct, 1)
        s2 = jnp.sum(ym * ym, axis=-1, keepdims=True)          # (ct, 1)
        mean = s1 * inv_m
        var = jnp.maximum(s2 * inv_m - mean * mean, 0.0)
        inv = lax.rsqrt(var + _IN_EPS)
        a_sc = g_ref[...] * inv * drop_scale                   # (ct, 1): 2*gamma*rsqrt
        b_sc = (b_ref[...] - mean * g_ref[...] * inv) * drop_scale
        t_val = y * a_sc + b_sc                                # single scale+bias pass

        # --- dropout (p=0.5) via on-chip counter hash: pure select ---------------------
        n = pl.program_id(0)
        c_blk = pl.program_id(1)
        row = lax.broadcasted_iota(jnp.int32, t_val.shape, 0) + c_blk * ct   # global chan
        col = lax.broadcasted_iota(jnp.int32, t_val.shape, 1)
        flat = (n * cout_total + row) * L + col                # unique per element/image
        h = _fmix32(flat * _PHI + seed_ref[0])
        keep = h >= 0                                          # P(keep) = 1/2 (sign bit)

        o_ref[0] = jnp.where(keep, jnp.maximum(t_val, 0.0), 0.0).astype(o_ref.dtype)

    return kernel


@functools.partial(jax.jit, static_argnames=("k", "s", "p"))
def conv_block_dropout(x, weight, gamma, beta, seed, k=4, s=2, p=1):
    """x: (N, Cin, H, W). weight: (Cout, Cin, k, k). gamma/beta: (Cout,). -> (N, Cout, Ho, Wo)."""
    if k != 4 or s != 2:
        # TODO(synk): general (k, s) path (module default / docstring is the 2x downsample).
        raise NotImplementedError("fused path implemented for k=4, s=2 (module default)")

    N, Cin, H, W = x.shape
    Cout = weight.shape[0]
    Hp, Wp = H + 2 * p, W + 2 * p
    assert Hp % 2 == 0 and Wp % 2 == 0, "padded spatial dims must be even for the 2x phase split"
    Ho, Wo = (Hp - k) // s + 1, (Wp - k) // s + 1
    Hh, Wh = Hp // 2, Wp // 2                    # = Ho + 1, Wo + 1
    assert Hh == Ho + 1 and Wh == Wo + 1
    M = Ho * Wo                                   # valid spatial outputs per image
    S = Hh * Wh                                   # flat phase-split plane length
    L = (Ho - 1) * Wh + Wo                        # flat conv-output length (incl. garbage cols)

    # Channel tile (second parallel grid axis: keeps both v7x TCs busy when N is 1/odd).
    if Cout <= 256:
        ct = Cout
    elif Cout % 256 == 0:
        ct = 256
    else:
        ct = Cout
    n_ct = Cout // ct

    # Pixel-unshuffle (2x2 phase split) of the zero-padded input — pure layout change, bf16.
    x_pad = jnp.pad(x, ((0, 0), (0, 0), (p, p), (p, p)))
    xs = x_pad.reshape(N, Cin, Hh, 2, Wh, 2).transpose(0, 3, 5, 1, 2, 4)   # (n, r, c, ci, u, v)
    xs = xs.reshape(N, 4 * Cin, S).astype(jnp.bfloat16)

    # Weight regrouped per 2x2 output tap, columns ordered (r, c, ci) to match xs channels.
    w6 = weight.reshape(Cout, Cin, 2, 2, 2, 2)                  # (co, ci, a, r, b, c)
    w_t = w6.transpose(2, 4, 0, 3, 5, 1).reshape(4, Cout, 4 * Cin).astype(jnp.bfloat16)

    g = gamma.reshape(Cout, 1).astype(jnp.float32)
    b = beta.reshape(Cout, 1).astype(jnp.float32)
    valid = ((jnp.arange(L, dtype=jnp.int32) % Wh) < Wo).astype(jnp.float32)[None, :]
    seed_arr = jnp.asarray(seed, dtype=jnp.int32).reshape(1)

    # Generation-aware VMEM budget derived from the actual block footprint.
    out_isz = jnp.dtype(x.dtype).itemsize
    footprint = (2 * (4 * Cin * S * 2)              # xs block (double-buffered, bf16)
                 + 2 * (4 * ct * 4 * Cin * 2)       # weight block
                 + 2 * (2 * ct * 4 + L * 4)         # gamma/beta/mask
                 + 2 * (ct * L * out_isz)           # output block
                 + 6 * ct * L * 4)                  # f32 intermediates
    cap = 64 * 1024 * 1024
    try:
        if jax.devices()[0].platform == "tpu":
            cap = int(pltpu.get_tpu_info().vmem_capacity_bytes)
    except Exception:
        pass
    if footprint > int(cap * 0.9):
        # TODO(synk): add M-tiling with two-phase instance-norm stats for very large planes.
        raise ValueError(f"per-step VMEM footprint {footprint} exceeds budget {int(cap*0.9)}")
    vmem_limit = min(int(cap * 0.85), max(32 * 1024 * 1024, 2 * footprint))

    out_flat = pl.pallas_call(
        _make_kernel(Cin, Cout, ct, Wh, L, M),
        out_shape=jax.ShapeDtypeStruct((N, Cout, L), x.dtype),
        grid_spec=pltpu.PrefetchScalarGridSpec(
            num_scalar_prefetch=1,                               # dropout seed -> SMEM
            grid=(N, n_ct),
            in_specs=[
                pl.BlockSpec((1, 4 * Cin, S), lambda n, c, seed: (n, 0, 0)),
                pl.BlockSpec((4, ct, 4 * Cin), lambda n, c, seed: (0, c, 0)),
                pl.BlockSpec((ct, 1), lambda n, c, seed: (c, 0)),
                pl.BlockSpec((ct, 1), lambda n, c, seed: (c, 0)),
                pl.BlockSpec((1, L), lambda n, c, seed: (0, 0)),
            ],
            out_specs=pl.BlockSpec((1, ct, L), lambda n, c, seed: (n, c, 0)),
        ),
        compiler_params=pltpu.CompilerParams(
            dimension_semantics=("parallel", "parallel"),
            vmem_limit_bytes=vmem_limit,
        ),
    )(seed_arr, xs, w_t, g, b, valid)

    # Drop the Wh-stride garbage column: pad 1 col -> (N, Cout, Ho, Wh) -> keep first Wo cols.
    out = jnp.pad(out_flat, ((0, 0), (0, 0), (0, Ho * Wh - L)))
    out = out.reshape(N, Cout, Ho, Wh)[..., :Wo]
    return out


if __name__ == "__main__":
    key = jax.random.PRNGKey(0)
    kx, kw, kg, kb = jax.random.split(key, 4)

    N, Cin, H, W = 2, 4, 16, 16
    Cout, ksz, stride, pad = 8, 4, 2, 1

    x = jax.random.normal(kx, (N, Cin, H, W), dtype=jnp.float32)
    weight = jax.random.normal(kw, (Cout, Cin, ksz, ksz), dtype=jnp.float32) * 0.1
    gamma = 1.0 + 0.1 * jax.random.normal(kg, (Cout,), dtype=jnp.float32)
    beta = 0.1 * jax.random.normal(kb, (Cout,), dtype=jnp.float32)
    seed = 1234

    out = conv_block_dropout(x, weight, gamma, beta, seed, k=ksz, s=stride, p=pad)
    out = jax.block_until_ready(out)
    assert out.shape == (N, Cout, 8, 8)

    # Pure-JAX reference for the deterministic part (conv -> instance norm -> relu), using the
    # same bf16 operands / f32 accumulation as the kernel.
    conv = jax.lax.conv_general_dilated(
        x.astype(jnp.bfloat16), weight.astype(jnp.bfloat16),
        window_strides=(stride, stride), padding=((pad, pad), (pad, pad)),
        dimension_numbers=("NCHW", "OIHW", "NCHW"),
        preferred_element_type=jnp.float32)
    mean = jnp.mean(conv, axis=(2, 3), keepdims=True)
    var = jnp.mean((conv - mean) ** 2, axis=(2, 3), keepdims=True)
    ref = (conv - mean) * jax.lax.rsqrt(var + _IN_EPS)
    ref = ref * gamma[None, :, None, None] + beta[None, :, None, None]
    ref = jnp.maximum(ref, 0.0)

    # Dropout(p=0.5, training): every output element must be either 0 (dropped) or 2*ref (kept).
    d_drop = jnp.abs(out)
    d_keep = jnp.abs(out - 2.0 * ref)
    tol = 3e-3 + 3e-3 * jnp.abs(2.0 * ref)
    assert bool(jnp.all(jnp.minimum(d_drop, d_keep) <= tol)), "mismatch vs conv+IN+ReLU reference"

    # Kept fraction among clearly-positive activations should be near 0.5.
    pos = ref > 1e-2
    kept = jnp.sum(jnp.where(pos, (out > 1e-3).astype(jnp.float32), 0.0))
    frac = float(kept / jnp.maximum(jnp.sum(pos.astype(jnp.float32)), 1.0))
    assert 0.2 < frac < 0.8, f"dropout keep fraction {frac} outside expected range"

    print("KERNEL_OK")
</pallas_src>

<mosaic_0001>
module attributes {stable_mosaic.version = 11 : i64} {
  func.func @kernel(%arg0: i32, %arg1: i32, %arg2: memref<1xi32, #tpu.memory_space<smem>>, %arg3: memref<1x16x81xbf16, #tpu.memory_space<vmem>>, %arg4: memref<4x8x16xbf16, #tpu.memory_space<vmem>>, %arg5: memref<8x1xf32, #tpu.memory_space<vmem>>, %arg6: memref<8x1xf32, #tpu.memory_space<vmem>>, %arg7: memref<1x71xf32, #tpu.memory_space<vmem>>, %arg8: memref<1x8x71xf32, #tpu.memory_space<vmem>>) attributes {dimension_semantics = [#tpu.dimension_semantics<parallel>, #tpu.dimension_semantics<parallel>], iteration_bounds = array<i64: 2, 1>, scalar_prefetch = 1 : i64, scratch_operands = 0 : i64, tpu.core_type = #tpu.core_type<tc>, window_params = [{transform_indices = @transform_0, window_bounds = array<i64: 1, 16, 81>}, {transform_indices = @transform_1, window_bounds = array<i64: 4, 8, 16>}, {transform_indices = @transform_2, window_bounds = array<i64: 8, 1>}, {transform_indices = @transform_3, window_bounds = array<i64: 8, 1>}, {pipeline_mode = #tpu.pipeline_mode<synchronous>, transform_indices = @transform_4, window_bounds = array<i64: 1, 71>}, {transform_indices = @transform_5, window_bounds = array<i64: 1, 8, 71>}]} {
    %c0 = arith.constant 0 : index
    %c0_0 = arith.constant 0 : index
    %c0_1 = arith.constant 0 : index
    %0 = vector.load %arg3[%c0, %c0_0, %c0_1] : memref<1x16x81xbf16, #tpu.memory_space<vmem>>, vector<1x16x71xbf16>
    %1 = vector.shape_cast %0 : vector<1x16x71xbf16> to vector<16x71xbf16>
    %c0_2 = arith.constant 0 : index
    %c0_3 = arith.constant 0 : index
    %c0_4 = arith.constant 0 : index
    %2 = vector.load %arg4[%c0_2, %c0_3, %c0_4] : memref<4x8x16xbf16, #tpu.memory_space<vmem>>, vector<1x8x16xbf16>
    %3 = vector.shape_cast %2 : vector<1x8x16xbf16> to vector<8x16xbf16>
    %cst = arith.constant dense<0.000000e+00> : vector<8x71xf32>
    %4 = tpu.matmul %3, %1, %cst {dimension_numbers = #tpu.dot_dimension_numbers<[1], [0], [0], [1], [0, 0, 1, 1], [], []>} : vector<8x16xbf16>, vector<16x71xbf16>, vector<8x71xf32> -> vector<8x71xf32>
    %c0_5 = arith.constant 0 : index
    %c0_6 = arith.constant 0 : index
    %c1 = arith.constant 1 : index
    %5 = vector.load %arg3[%c0_5, %c0_6, %c1] : memref<1x16x81xbf16, #tpu.memory_space<vmem>>, vector<1x16x71xbf16>
    %6 = vector.shape_cast %5 : vector<1x16x71xbf16> to vector<16x71xbf16>
    %c1_7 = arith.constant 1 : index
    %c0_8 = arith.constant 0 : index
    %c0_9 = arith.constant 0 : index
    %7 = vector.load %arg4[%c1_7, %c0_8, %c0_9] : memref<4x8x16xbf16, #tpu.memory_space<vmem>>, vector<1x8x16xbf16>
    %8 = vector.shape_cast %7 : vector<1x8x16xbf16> to vector<8x16xbf16>
    %cst_10 = arith.constant dense<0.000000e+00> : vector<8x71xf32>
    %9 = tpu.matmul %8, %6, %cst_10 {dimension_numbers = #tpu.dot_dimension_numbers<[1], [0], [0], [1], [0, 0, 1, 1], [], []>} : vector<8x16xbf16>, vector<16x71xbf16>, vector<8x71xf32> -> vector<8x71xf32>
    %10 = arith.addf %4, %9 : vector<8x71xf32>
    %c0_11 = arith.constant 0 : index
    %c0_12 = arith.constant 0 : index
    %c9 = arith.constant 9 : index
    %11 = vector.load %arg3[%c0_11, %c0_12, %c9] : memref<1x16x81xbf16, #tpu.memory_space<vmem>>, vector<1x16x71xbf16>
    %12 = vector.shape_cast %11 : vector<1x16x71xbf16> to vector<16x71xbf16>
    %c2 = arith.constant 2 : index
    %c0_13 = arith.constant 0 : index
    %c0_14 = arith.constant 0 : index
    %13 = vector.load %arg4[%c2, %c0_13, %c0_14] : memref<4x8x16xbf16, #tpu.memory_space<vmem>>, vector<1x8x16xbf16>
    %14 = vector.shape_cast %13 : vector<1x8x16xbf16> to vector<8x16xbf16>
    %cst_15 = arith.constant dense<0.000000e+00> : vector<8x71xf32>
    %15 = tpu.matmul %14, %12, %cst_15 {dimension_numbers = #tpu.dot_dimension_numbers<[1], [0], [0], [1], [0, 0, 1, 1], [], []>} : vector<8x16xbf16>, vector<16x71xbf16>, vector<8x71xf32> -> vector<8x71xf32>
    %16 = arith.addf %10, %15 : vector<8x71xf32>
    %c0_16 = arith.constant 0 : index
    %c0_17 = arith.constant 0 : index
    %c10 = arith.constant 10 : index
    %17 = vector.load %arg3[%c0_16, %c0_17, %c10] : memref<1x16x81xbf16, #tpu.memory_space<vmem>>, vector<1x16x71xbf16>
    %18 = vector.shape_cast %17 : vector<1x16x71xbf16> to vector<16x71xbf16>
    %c3 = arith.constant 3 : index
    %c0_18 = arith.constant 0 : index
    %c0_19 = arith.constant 0 : index
    %19 = vector.load %arg4[%c3, %c0_18, %c0_19] : memref<4x8x16xbf16, #tpu.memory_space<vmem>>, vector<1x8x16xbf16>
    %20 = vector.shape_cast %19 : vector<1x8x16xbf16> to vector<8x16xbf16>
    %cst_20 = arith.constant dense<0.000000e+00> : vector<8x71xf32>
    %21 = tpu.matmul %20, %18, %cst_20 {dimension_numbers = #tpu.dot_dimension_numbers<[1], [0], [0], [1], [0, 0, 1, 1], [], []>} : vector<8x16xbf16>, vector<16x71xbf16>, vector<8x71xf32> -> vector<8x71xf32>
    %22 = arith.addf %16, %21 : vector<8x71xf32>
    %c0_21 = arith.constant 0 : index
    %c0_22 = arith.constant 0 : index
    %23 = vector.load %arg7[%c0_21, %c0_22] : memref<1x71xf32, #tpu.memory_space<vmem>>, vector<1x71xf32>
    %24 = vector.broadcast %23 : vector<1x71xf32> to vector<8x71xf32>
    %25 = arith.mulf %22, %24 : vector<8x71xf32>
    %cst_23 = arith.constant dense<0.000000e+00> : vector<8xf32>
    %26 = vector.multi_reduction <add>, %25, %cst_23 [1] : vector<8x71xf32> to vector<8xf32>
    %27 = vector.shape_cast %26 : vector<8xf32> to vector<8x1xf32>
    %28 = arith.mulf %25, %25 : vector<8x71xf32>
    %cst_24 = arith.constant dense<0.000000e+00> : vector<8xf32>
    %29 = vector.multi_reduction <add>, %28, %cst_24 [1] : vector<8x71xf32> to vector<8xf32>
    %30 = vector.shape_cast %29 : vector<8xf32> to vector<8x1xf32>
    %cst_25 = arith.constant 1.562500e-02 : f32
    %31 = vector.broadcast %cst_25 : f32 to vector<8x1xf32>
    %32 = arith.mulf %27, %31 : vector<8x1xf32>
    %cst_26 = arith.constant 1.562500e-02 : f32
    %33 = vector.broadcast %cst_26 : f32 to vector<8x1xf32>
    %34 = arith.mulf %30, %33 : vector<8x1xf32>
    %35 = arith.mulf %32, %32 : vector<8x1xf32>
    %36 = arith.subf %34, %35 : vector<8x1xf32>
    %cst_27 = arith.constant 0.000000e+00 : f32
    %37 = vector.broadcast %cst_27 : f32 to vector<8x1xf32>
    %38 = arith.maximumf %36, %37 : vector<8x1xf32>
    %cst_28 = arith.constant 9.99999974E-6 : f32
    %39 = vector.broadcast %cst_28 : f32 to vector<8x1xf32>
    %40 = arith.addf %38, %39 : vector<8x1xf32>
    %41 = math.rsqrt %40 : vector<8x1xf32>
    %c0_29 = arith.constant 0 : index
    %c0_30 = arith.constant 0 : index
    %42 = vector.load %arg5[%c0_29, %c0_30] : memref<8x1xf32, #tpu.memory_space<vmem>>, vector<8x1xf32>
    %43 = arith.mulf %42, %41 : vector<8x1xf32>
    %cst_31 = arith.constant 2.000000e+00 : f32
    %44 = vector.broadcast %cst_31 : f32 to vector<8x1xf32>
    %45 = arith.mulf %43, %44 : vector<8x1xf32>
    %c0_32 = arith.constant 0 : index
    %c0_33 = arith.constant 0 : index
    %46 = vector.load %arg6[%c0_32, %c0_33] : memref<8x1xf32, #tpu.memory_space<vmem>>, vector<8x1xf32>
    %c0_34 = arith.constant 0 : index
    %c0_35 = arith.constant 0 : index
    %47 = vector.load %arg5[%c0_34, %c0_35] : memref<8x1xf32, #tpu.memory_space<vmem>>, vector<8x1xf32>
    %48 = arith.mulf %32, %47 : vector<8x1xf32>
    %49 = arith.mulf %48, %41 : vector<8x1xf32>
    %50 = arith.subf %46, %49 : vector<8x1xf32>
    %cst_36 = arith.constant 2.000000e+00 : f32
    %51 = vector.broadcast %cst_36 : f32 to vector<8x1xf32>
    %52 = arith.mulf %50, %51 : vector<8x1xf32>
    %53 = vector.broadcast %45 : vector<8x1xf32> to vector<8x71xf32>
    %54 = arith.mulf %22, %53 : vector<8x71xf32>
    %55 = vector.broadcast %52 : vector<8x1xf32> to vector<8x71xf32>
    %56 = arith.addf %54, %55 : vector<8x71xf32>
    %57 = tpu.iota {dimensions = array<i32: 0>} : vector<8x71xi32>
    %c8_i32 = arith.constant 8 : i32
    %58 = arith.muli %arg1, %c8_i32 : i32
    %59 = vector.broadcast %58 : i32 to vector<8x71xi32>
    %60 = arith.addi %57, %59 : vector<8x71xi32>
    %61 = tpu.iota {dimensions = array<i32: 1>} : vector<8x71xi32>
    %c8_i32_37 = arith.constant 8 : i32
    %62 = arith.muli %arg0, %c8_i32_37 : i32
    %63 = vector.broadcast %62 : i32 to vector<8x71xi32>
    %64 = arith.addi %63, %60 : vector<8x71xi32>
    %c71_i32 = arith.constant 71 : i32
    %65 = vector.broadcast %c71_i32 : i32 to vector<8x71xi32>
    %66 = arith.muli %64, %65 : vector<8x71xi32>
    %67 = arith.addi %66, %61 : vector<8x71xi32>
    %c-1640531527_i32 = arith.constant -1640531527 : i32
    %68 = vector.broadcast %c-1640531527_i32 : i32 to vector<8x71xi32>
    %69 = arith.muli %67, %68 : vector<8x71xi32>
    %c0_38 = arith.constant 0 : index
    %70 = memref.load %arg2[%c0_38] : memref<1xi32, #tpu.memory_space<smem>>
    %71 = vector.broadcast %70 : i32 to vector<8x71xi32>
    %72 = arith.addi %69, %71 : vector<8x71xi32>
    %c16_i32 = arith.constant 16 : i32
    %73 = vector.broadcast %c16_i32 : i32 to vector<8x71xi32>
    %74 = arith.shrui %72, %73 : vector<8x71xi32>
    %75 = arith.xori %72, %74 : vector<8x71xi32>
    %c-2048144789_i32 = arith.constant -2048144789 : i32
    %76 = vector.broadcast %c-2048144789_i32 : i32 to vector<8x71xi32>
    %77 = arith.muli %75, %76 : vector<8x71xi32>
    %c13_i32 = arith.constant 13 : i32
    %78 = vector.broadcast %c13_i32 : i32 to vector<8x71xi32>
    %79 = arith.shrui %77, %78 : vector<8x71xi32>
    %80 = arith.xori %77, %79 : vector<8x71xi32>
    %c-1028477387_i32 = arith.constant -1028477387 : i32
    %81 = vector.broadcast %c-1028477387_i32 : i32 to vector<8x71xi32>
    %82 = arith.muli %80, %81 : vector<8x71xi32>
    %c16_i32_39 = arith.constant 16 : i32
    %83 = vector.broadcast %c16_i32_39 : i32 to vector<8x71xi32>
    %84 = arith.shrui %82, %83 : vector<8x71xi32>
    %85 = arith.xori %82, %84 : vector<8x71xi32>
    %c0_i32 = arith.constant 0 : i32
    %86 = vector.broadcast %c0_i32 : i32 to vector<8x71xi32>
    %87 = arith.cmpi sge, %85, %86 : vector<8x71xi32>
    %cst_40 = arith.constant 0.000000e+00 : f32
    %88 = vector.broadcast %cst_40 : f32 to vector<8x71xf32>
    %89 = arith.maximumf %56, %88 : vector<8x71xf32>
    %cst_41 = arith.constant 0.000000e+00 : f32
    %90 = vector.broadcast %cst_41 : f32 to vector<8x71xf32>
    %91 = arith.select %87, %89, %90 : vector<8x71xi1>, vector<8x71xf32>
    %c0_42 = arith.constant 0 : index
    %c0_43 = arith.constant 0 : index
    %c0_44 = arith.constant 0 : index
    %92 = vector.load %arg8[%c0_42, %c0_43, %c0_44] : memref<1x8x71xf32, #tpu.memory_space<vmem>>, vector<1x8x71xf32>
    %93 = vector.shape_cast %92 : vector<1x8x71xf32> to vector<8x71xf32>
    %94 = vector.shape_cast %91 : vector<8x71xf32> to vector<1x8x71xf32>
    tpu.vector_store %arg8[%c0_42, %c0_43, %c0_44], %94 {strides = array<i32>} : memref<1x8x71xf32, #tpu.memory_space<vmem>>, vector<1x8x71xf32>,
    return
  }
  func.func @transform_0(%arg0: i32, %arg1: i32, %arg2: memref<1xi32, #tpu.memory_space<smem>>) -> (i32, i32, i32) {
    %c0_i32 = arith.constant 0 : i32
    %c0_i32_0 = arith.constant 0 : i32
    %c0_i32_1 = arith.constant 0 : i32
    return %arg0, %c0_i32, %c0_i32_0 : i32, i32, i32
  }
  func.func @transform_1(%arg0: i32, %arg1: i32, %arg2: memref<1xi32, #tpu.memory_space<smem>>) -> (i32, i32, i32) {
    %c0_i32 = arith.constant 0 : i32
    %c0_i32_0 = arith.constant 0 : i32
    %c0_i32_1 = arith.constant 0 : i32
    return %c0_i32, %arg1, %c0_i32_0 : i32, i32, i32
  }
  func.func @transform_2(%arg0: i32, %arg1: i32, %arg2: memref<1xi32, #tpu.memory_space<smem>>) -> (i32, i32) {
    %c0_i32 = arith.constant 0 : i32
    %c0_i32_0 = arith.constant 0 : i32
    return %arg1, %c0_i32 : i32, i32
  }
  func.func @transform_3(%arg0: i32, %arg1: i32, %arg2: memref<1xi32, #tpu.memory_space<smem>>) -> (i32, i32) {
    %c0_i32 = arith.constant 0 : i32
    %c0_i32_0 = arith.constant 0 : i32
    return %arg1, %c0_i32 : i32, i32
  }
  func.func @transform_4(%arg0: i32, %arg1: i32, %arg2: memref<1xi32, #tpu.memory_space<smem>>) -> (i32, i32) {
    %c0_i32 = arith.constant 0 : i32
    %c0_i32_0 = arith.constant 0 : i32
    %c0_i32_1 = arith.constant 0 : i32
    return %c0_i32, %c0_i32_0 : i32, i32
  }
  func.func @transform_5(%arg0: i32, %arg1: i32, %arg2: memref<1xi32, #tpu.memory_space<smem>>) -> (i32, i32, i32) {
    %c0_i32 = arith.constant 0 : i32
    %c0_i32_0 = arith.constant 0 : i32
    return %arg0, %arg1, %c0_i32 : i32, i32, i32
  }
}

</mosaic_0001>

<llo_original>
// kernel: conv_block_dropout.1
$region0: #{conv_block_dropout.1}
  #allocation0 [shape = 'u32[]', space=smem, size = 0x4, offset = 0x4, fixed_abs, tag = 'smem constant byte address 0x4 - core index']
  #allocation1 [shape = 'u32[144,128]{1,0:T(1,128)}', space=vmem, size = 0x12000, scoped, tag = 'internal scratch']
  #allocation2 [shape = 's32[1]{0}', space=sflag, size = 0x4, scoped, tag = 'scoped memory for conv_block_dropout.1']
  #allocation3 [shape = 's32[1]{0:T(128)S(6)}', space=smem, size = 0x200, scoped, tag = 'prefetched SMEM operand 0']
  %s0 = inlined_call_operand.<no memory space> [shape: s32[1], index: 0, kind: input, shape index: {}]
  %s1 = inlined_call_operand.vmem [shape: bf16[2,16,81], index: 1, kind: input, shape index: {}]
  %s2 = inlined_call_operand.vmem [shape: bf16[4,8,16], index: 2, kind: input, shape index: {}]
  %s3 = inlined_call_operand.vmem [shape: f32[8,1], index: 3, kind: input, shape index: {}]
  %s4 = inlined_call_operand.vmem [shape: f32[8,1], index: 4, kind: input, shape index: {}]
  %s5 = inlined_call_operand.vmem [shape: f32[1,71], index: 5, kind: input, shape index: {}]
  %s6 = inlined_call_operand.vmem [shape: f32[2,8,71], index: 6, kind: output, shape index: {}]
  %s7 = sld [smem:[#allocation0]]
  $region53: #{conv_block_dropout.1} parent=0
    _
  %s9 = ssub.s32 1, %s7
  %s10 = scalar_select 0, %s9, %s7
  %11 = sst [smem:[#allocation3]] %s0
  loop: start=0, step=1, limit=4
  $region2: #{conv_block_dropout.1} parent=0 // loop_pre_header
    _
  $region3: #{conv_block_dropout.1} parent=0 // loop_header
    %s13 = sphi 0, %s17
    %p14 = scmp.ge.s32.totalorder %s13, 4
    %s20 = sphi 0, %s32
    %s21 = sphi 0, %s28
    %s22 = sphi 0, %s20
    %s23 = sphi 0, %s21
    %s24 = sphi 0, %s22
    %s25 = sphi 0, %s23
    %s35 = sphi 0, %s37
    %s38 = sphi 0, %s35
    %s39 = sphi 0, %s38
    %s55 = sphi 0, %s39
    %s61 = sphi 0, %s63
    %s64 = sphi 0, %s61
    %s65 = sphi 0, %s64
    %s81 = sphi 0, %s65
    %s87 = sphi 0, %s89
    %s90 = sphi 0, %s87
    %s91 = sphi 0, %s90
    %s107 = sphi 0, %s91
    %s113 = sphi 0, %s115
    %s116 = sphi 0, %s113
    %s117 = sphi 0, %s116
    %s133 = sphi 0, %s117
    %s137 = sphi 0, %s137
    %s139 = sphi 0, %s137
    %s140 = sphi 0, %s139
    %s154 = sphi 0, %s140
    %s162 = sphi 0, %s164
    %s165 = sphi 0, %s162
    %s166 = sphi 0, %s165
    %s182 = sphi 0, %s166
  $region4: #{conv_block_dropout.1} parent=0 // loop_header_branch
    %16 = sbr.rel (%p14) target = $region8
  $region5: #{conv_block_dropout.1} parent=0 // loop_body
    %s18 = ssub.s32 %s13, 1
    %s19 = ssub.s32 %s13, 2
    %s26 = sadd.s32 1, %s21
    %p27 = scmp.ge.s32.totalorder %s26, 1
    %s28 = scalar_select %p27, 0, %s26
    %s29 = sadd.s32 1, %s20
    %s30 = scalar_select %p27, %s29, %s20
    %p31 = scmp.ge.s32.totalorder %s30, 2
    %s32 = scalar_select %p31, 0, %s30
    %s33 = ssub.s32 %s20, %s32
    %p34 = scmp.eq.s32.totalorder %s33, 0
    %s36 = sadd.s32 %s35, 1
    %s37 = scalar_select %p34, %s35, %s36
    %p40 = pneg %p34
    %p41 = scmp.eq.s32.totalorder %s13, 1
    %p42 = por %p40, %p41
    %p43 = scmp.ne.s32.totalorder %s35, %s38
    %p44 = scmp.eq.s32.totalorder %s13, 0
    %p45 = por %p43, %p44
    %p46 = scmp.ne.s32.totalorder %s35, %s38
    %p47 = scmp.eq.s32.totalorder %s18, 1
    %p48 = por %p46, %p47
    %p49 = scmp.ne.s32.totalorder %s38, %s39
    %p50 = scmp.eq.s32.totalorder %s18, 0
    %p51 = por %p49, %p50
    %p52 = scmp.ne.s32.totalorder %s38, %s39
    %p53 = scmp.eq.s32.totalorder %s19, 1
    %p54 = por %p52, %p53
    %p56 = scmp.ne.s32.totalorder %s39, %s55
    %p57 = scmp.eq.s32.totalorder %s19, 0
    %p58 = por %p56, %p57
    %s59 = ssub.s32 %s21, %s28
    %p60 = scmp.eq.s32.totalorder %s59, 0
    %s62 = sadd.s32 %s61, 1
    %s63 = scalar_select %p60, %s61, %s62
    %p66 = pneg %p60
    %p67 = scmp.eq.s32.totalorder %s13, 1
    %p68 = por %p66, %p67
    %p69 = scmp.ne.s32.totalorder %s61, %s64
    %p70 = scmp.eq.s32.totalorder %s13, 0
    %p71 = por %p69, %p70
    %p72 = scmp.ne.s32.totalorder %s61, %s64
    %p73 = scmp.eq.s32.totalorder %s18, 1
    %p74 = por %p72, %p73
    %p75 = scmp.ne.s32.totalorder %s64, %s65
    %p76 = scmp.eq.s32.totalorder %s18, 0
    %p77 = por %p75, %p76
    %p78 = scmp.ne.s32.totalorder %s64, %s65
    %p79 = scmp.eq.s32.totalorder %s19, 1
    %p80 = por %p78, %p79
    %p82 = scmp.ne.s32.totalorder %s65, %s81
    %p83 = scmp.eq.s32.totalorder %s19, 0
    %p84 = por %p82, %p83
    %s85 = ssub.s32 %s21, %s28
    %p86 = scmp.eq.s32.totalorder %s85, 0
    %s88 = sadd.s32 %s87, 1
    %s89 = scalar_select %p86, %s87, %s88
    %p92 = pneg %p86
    %p93 = scmp.eq.s32.totalorder %s13, 1
    %p94 = por %p92, %p93
    %p95 = scmp.ne.s32.totalorder %s87, %s90
    %p96 = scmp.eq.s32.totalorder %s13, 0
    %p97 = por %p95, %p96
    %p98 = scmp.ne.s32.totalorder %s87, %s90
    %p99 = scmp.eq.s32.totalorder %s18, 1
    %p100 = por %p98, %p99
    %p101 = scmp.ne.s32.totalorder %s90, %s91
    %p102 = scmp.eq.s32.totalorder %s18, 0
    %p103 = por %p101, %p102
    %p104 = scmp.ne.s32.totalorder %s90, %s91
    %p105 = scmp.eq.s32.totalorder %s19, 1
    %p106 = por %p104, %p105
    %p108 = scmp.ne.s32.totalorder %s91, %s107
    %p109 = scmp.eq.s32.totalorder %s19, 0
    %p110 = por %p108, %p109
    %s111 = ssub.s32 %s21, %s28
    %p112 = scmp.eq.s32.totalorder %s111, 0
    %s114 = sadd.s32 %s113, 1
    %s115 = scalar_select %p112, %s113, %s114
    %p118 = pneg %p112
    %p119 = scmp.eq.s32.totalorder %s13, 1
    %p120 = por %p118, %p119
    %p121 = scmp.ne.s32.totalorder %s113, %s116
    %p122 = scmp.eq.s32.totalorder %s13, 0
    %p123 = por %p121, %p122
    %p124 = scmp.ne.s32.totalorder %s113, %s116
    %p125 = scmp.eq.s32.totalorder %s18, 1
    %p126 = por %p124, %p125
    %p127 = scmp.ne.s32.totalorder %s116, %s117
    %p128 = scmp.eq.s32.totalorder %s18, 0
    %p129 = por %p127, %p128
    %p130 = scmp.ne.s32.totalorder %s116, %s117
    %p131 = scmp.eq.s32.totalorder %s19, 1
    %p132 = por %p130, %p131
    %p134 = scmp.ne.s32.totalorder %s117, %s133
    %p135 = scmp.eq.s32.totalorder %s19, 0
    %p136 = por %p134, %p135
    %s138 = sadd.s32 %s137, 1
    %p141 = scmp.eq.s32.totalorder %s13, 1
    %p142 = scmp.ne.s32.totalorder %s137, %s139
    %p143 = scmp.eq.s32.totalorder %s13, 0
    %p144 = por %p142, %p143
    %p145 = scmp.ne.s32.totalorder %s137, %s139
    %p146 = scmp.eq.s32.totalorder %s18, 1
    %p147 = por %p145, %p146
    %p148 = scmp.ne.s32.totalorder %s139, %s140
    %p149 = scmp.eq.s32.totalorder %s18, 0
    %p150 = por %p148, %p149
    %p151 = scmp.ne.s32.totalorder %s139, %s140
    %p152 = scmp.eq.s32.totalorder %s19, 1
    %p153 = por %p151, %p152
    %p155 = scmp.ne.s32.totalorder %s140, %s154
    %p156 = scmp.eq.s32.totalorder %s19, 0
    %p157 = por %p155, %p156
    %s158 = ssub.s32 %s20, %s32
    %s159 = ssub.s32 %s21, %s28
    %s160 = sor.u32 %s158, %s159
    %p161 = scmp.eq.s32.totalorder %s160, 0
    %s163 = sadd.s32 %s162, 1
    %s164 = scalar_select %p161, %s162, %s163
    %p167 = pneg %p161
    %p168 = scmp.eq.s32.totalorder %s13, 1
    %p169 = por %p167, %p168
    %p170 = scmp.ne.s32.totalorder %s162, %s165
    %p171 = scmp.eq.s32.totalorder %s13, 0
    %p172 = por %p170, %p171
    %p173 = scmp.ne.s32.totalorder %s162, %s165
    %p174 = scmp.eq.s32.totalorder %s18, 1
    %p175 = por %p173, %p174
    %p176 = scmp.ne.s32.totalorder %s165, %s166
    %p177 = scmp.eq.s32.totalorder %s18, 0
    %p178 = por %p176, %p177
    %p179 = scmp.ne.s32.totalorder %s165, %s166
    %p180 = scmp.eq.s32.totalorder %s19, 1
    %p181 = por %p179, %p180
    %p183 = scmp.ne.s32.totalorder %s166, %s182
    %p184 = scmp.eq.s32.totalorder %s19, 0
    %p185 = por %p183, %p184
    %p186 = scmp.le.s32.totalorder 1, %s13
    %p187 = scmp.lt.s32.totalorder %s13, 3
    %p188 = pnand %p186, %p187
    %p189 = pneg %p188
    // Predicated region
    $region9: #{conv_block_dropout.1} parent=5 // pred_check
      _
    $region10: #{conv_block_dropout.1} parent=5 // pred_check_branch
      %191 = sbr.rel (%p188) target = $region12
    $region11: #{conv_block_dropout.1} parent=5 // pred_region
      %s192 = ssub.s32 %s13, 1
      // Predicated region
      $region13: #{conv_block_dropout.1} parent=11 // pred_check
        %p193 = pneg %p77
      $region14: #{conv_block_dropout.1} parent=11 // pred_check_branch
        %195 = sbr.rel (%p193) target = $region16
      $region15: #{conv_block_dropout.1} parent=11 // pred_region
        %p196 = scmp.lt.s32.totalorder %s23, 0
        %s197 = scalar_select %p196, %s23, 0
        %s198 = smul.addr %s197, 4
        %s199 = scalar_lea.vmem %s2, %s198
      $region16: #{conv_block_dropout.1} parent=11 // pred_fallthru
        _
      // Predicated region
      $region17: #{conv_block_dropout.1} parent=11 // pred_check
        %p200 = pneg %p103
      $region18: #{conv_block_dropout.1} parent=11 // pred_check_branch
        %202 = sbr.rel (%p200) target = $region20
      $region19: #{conv_block_dropout.1} parent=11 // pred_region
        %p203 = scmp.lt.s32.totalorder %s23, 0
        %s204 = scalar_select %p203, %s23, 0
        %s205 = smul.addr %s204, 8
        %s206 = scalar_lea.vmem %s3, %s205
      $region20: #{conv_block_dropout.1} parent=11 // pred_fallthru
        _
      // Predicated region
      $region21: #{conv_block_dropout.1} parent=11 // pred_check
        %p207 = pneg %p129
      $region22: #{conv_block_dropout.1} parent=11 // pred_check_branch
        %209 = sbr.rel (%p207) target = $region24
      $region23: #{conv_block_dropout.1} parent=11 // pred_region
        %p210 = scmp.lt.s32.totalorder %s23, 0
        %s211 = scalar_select %p210, %s23, 0
        %s212 = smul.addr %s211, 8
        %s213 = scalar_lea.vmem %s4, %s212
      $region24: #{conv_block_dropout.1} parent=11 // pred_fallthru
        _
      // Predicated region
      $region25: #{conv_block_dropout.1} parent=11 // pred_check
        %p214 = pneg %p150
      $region26: #{conv_block_dropout.1} parent=11 // pred_check_branch
        %216 = sbr.rel (%p214) target = $region28
      $region27: #{conv_block_dropout.1} parent=11 // pred_region
        _
      $region28: #{conv_block_dropout.1} parent=11 // pred_fallthru
        _
    $region12: #{conv_block_dropout.1} parent=5 // pred_fallthru
      _
    %p217 = scmp.lt.s32.totalorder %s13, 2
    // Predicated region
    $region29: #{conv_block_dropout.1} parent=5 // pred_check
      %p218 = pneg %p217
    $region30: #{conv_block_dropout.1} parent=5 // pred_check_branch
      %220 = sbr.rel (%p218) target = $region32
    $region31: #{conv_block_dropout.1} parent=5 // pred_region
      // Predicated region
      $region33: #{conv_block_dropout.1} parent=31 // pred_check
        %p221 = pneg %p45
      $region34: #{conv_block_dropout.1} parent=31 // pred_check_branch
        %223 = sbr.rel (%p221) target = $region36
      $region35: #{conv_block_dropout.1} parent=31 // pred_region
        %p224 = scmp.lt.s32.totalorder %s20, 1
        %s225 = scalar_select %p224, %s20, 1
        %s226 = smul.addr %s225, 2
        %s227 = smul.addr %s226, 4
        %s228 = scalar_lea.vmem %s1, %s227
      $region36: #{conv_block_dropout.1} parent=31 // pred_fallthru
        _
    $region32: #{conv_block_dropout.1} parent=5 // pred_fallthru
      _
    %p229 = scmp.le.s32.totalorder 1, %s13
    %p230 = scmp.lt.s32.totalorder %s13, 3
    %p231 = pnand %p229, %p230
    %p232 = pneg %p231
    // Predicated region
    $region37: #{conv_block_dropout.1} parent=5 // pred_check
      _
    $region38: #{conv_block_dropout.1} parent=5 // pred_check_branch
      %234 = sbr.rel (%p231) target = $region40
    $region39: #{conv_block_dropout.1} parent=5 // pred_region
      %s235 = ssub.s32 %s13, 1
      %p236 = scmp.lt.s32.totalorder %s22, 1
      %s237 = scalar_select %p236, %s22, 1
      %s238 = smul.addr %s237, 2
      %s239 = smul.addr %s238, 4
      %s240 = scalar_lea.vmem %s1, %s239
      %p241 = pneg %p51
      %p242 = pneg %p48
      %p243 = scmp.lt.s32.totalorder %s23, 0
      %s244 = scalar_select %p243, %s23, 0
      %s245 = smul.addr %s244, 4
      %s246 = scalar_lea.vmem %s2, %s245
      %p247 = pneg %p77
      %p248 = pneg %p74
      %p249 = scmp.lt.s32.totalorder %s23, 0
      %s250 = scalar_select %p249, %s23, 0
      %s251 = smul.addr %s250, 8
      %s252 = scalar_lea.vmem %s3, %s251
      %p253 = pneg %p103
      %p254 = pneg %p100
      %p255 = scmp.lt.s32.totalorder %s23, 0
      %s256 = scalar_select %p255, %s23, 0
      %s257 = smul.addr %s256, 8
      %s258 = scalar_lea.vmem %s4, %s257
      %p259 = pneg %p129
      %p260 = pneg %p126
      %p261 = pneg %p150
      %p262 = pneg %p147
      %p263 = pneg %p178
      %p264 = pneg %p175
      %p265 = scmp.lt.s32.totalorder %s22, 1
      %s266 = scalar_select %p265, %s22, 1
      %p267 = scmp.lt.s32.totalorder %s23, 0
      %s268 = scalar_select %p267, %s23, 0
      %s269 = sadd.s32 %s268, %s266
      %s270 = smul.addr %s269, 8
      %s271 = scalar_lea.vmem %s6, %s270
      %p272 = scmp.lt.s32.totalorder %s22, 1
      %s273 = scalar_select %p272, %s22, 1
      %s274 = smul.addr %s273, 2
      %s275 = smul.addr %s274, 4
      %s276 = scalar_lea.vmem %s1, %s275
      %p277 = scmp.lt.s32.totalorder %s23, 0
      %s278 = scalar_select %p277, %s23, 0
      %s279 = smul.addr %s278, 4
      %s280 = scalar_lea.vmem %s2, %s279
      %p281 = scmp.lt.s32.totalorder %s23, 0
      %s282 = scalar_select %p281, %s23, 0
      %s283 = smul.addr %s282, 8
      %s284 = scalar_lea.vmem %s3, %s283
      %p285 = scmp.lt.s32.totalorder %s23, 0
      %s286 = scalar_select %p285, %s23, 0
      %s287 = smul.addr %s286, 8
      %s288 = scalar_lea.vmem %s4, %s287
      %p289 = scmp.lt.s32.totalorder %s22, 1
      %s290 = scalar_select %p289, %s22, 1
      %p291 = scmp.lt.s32.totalorder %s23, 0
      %s292 = scalar_select %p291, %s23, 0
      %s293 = sadd.s32 %s292, %s290
      %s294 = smul.addr %s293, 8
      %s295 = scalar_lea.vmem %s6, %s294
      %v297 = vld [vmem:[%s276] sm:$0xf]
      %v298 = vld [vmem:[%s276 + $0x4] sm:$0xf]
      %v299 = vld [vmem:[%s280] sm:$0xf]
      %s300 = scalar_lea.vmem %s280, 4
      %v301 = vld [vmem:[%s300] sm:$0xf]
      %v304 = vunpack.c.l.b16 %v297
      %v305 = vunpack.c.l.b16 %v298
      %v306 = vpack.c.b16 %v305, %v304
      %307 = vrot.lane.b32.xlu0 %v306, 127
      %v308 = vpop.permute.xlu0 %307
      %vm310 = vcmask 130048
      %v312 = vsel %vm310, %v301, 0
      %314 = vmatprep.subr.bf16.mxu0 0
      %315 = vmatpush1.bf16.msra.mxu0 %v308
      %316 = vmatprep.subr.bf16.mxu0 0
      %317 = vmatpush1.bf16.msra.mxu0 0
      %318 = vmatprep.subr.bf16.mxu0 0
      %319 = vmatpush1.bf16.msra.mxu0 0
      %320 = vmatprep.subr.bf16.mxu0 0
      %321 = vmatpush1.bf16.msra.mxu0 0
      %322 = vmatprep.subr.bf16.mxu0 0
      %323 = vmatpush1.bf16.msra.mxu0 0
      %324 = vmatprep.subr.bf16.mxu0 0
      %325 = vmatpush1.bf16.msra.mxu0 0
      %326 = vmatprep.subr.bf16.mxu0 0
      %327 = vmatpush1.bf16.msra.mxu0 0
      %328 = vmatprep.subr.bf16.mxu0 0
      %329 = vmatpush1.bf16.msra.mxu0 0
      %330 = vmatprep.subr.bf16.mxu0 0
      %331 = vmatpush1.bf16.msra.mxu0 0
      %332 = vmatprep.subr.bf16.mxu0 0
      %333 = vmatpush1.bf16.msra.mxu0 0
      %334 = vmatprep.subr.bf16.mxu0 0
      %335 = vmatpush1.bf16.msra.mxu0 0
      %336 = vmatprep.subr.bf16.mxu0 0
      %337 = vmatpush1.bf16.msra.mxu0 0
      %338 = vmatprep.subr.bf16.mxu0 0
      %339 = vmatpush1.bf16.msra.mxu0 0
      %340 = vmatprep.subr.bf16.mxu0 0
      %341 = vmatpush1.bf16.msra.mxu0 0
      %342 = vmatprep.subr.bf16.mxu0 0
      %343 = vmatpush1.bf16.msra.mxu0 0
      %344 = vmatprep.subr.bf16.mxu0 0
      %345 = vmatpush1.bf16.msra.mxu0 0
      %346 = vmatprep.mubr.bf16.mxu0 0
      %347 = vmatmul.mubr.bf16.gmra.mrb[0].mxu0 %v312
      %v348 = vpop.f32.mrb[0].mxu0
      %v349 = vadd.f32 0.0, %v348
      %v350 = vpop.f32.mrb[0].mxu0
      %v351 = vpop.f32.mrb[0].mxu0
      %v352 = vpop.f32.mrb[0].mxu0
      %353 = vdwg.mxu0
      %v356 = vsel %vm310, %v299, 0
      %358 = vmatprep.subr.bf16.mxu0 0
      %359 = vmatpush1.bf16.msra.mxu0 %v306
      %360 = vmatprep.subr.bf16.mxu0 0
      %361 = vmatpush1.bf16.msra.mxu0 0
      %362 = vmatprep.subr.bf16.mxu0 0
      %363 = vmatpush1.bf16.msra.mxu0 0
      %364 = vmatprep.subr.bf16.mxu0 0
      %365 = vmatpush1.bf16.msra.mxu0 0
      %366 = vmatprep.subr.bf16.mxu0 0
      %367 = vmatpush1.bf16.msra.mxu0 0
      %368 = vmatprep.subr.bf16.mxu0 0
      %369 = vmatpush1.bf16.msra.mxu0 0
      %370 = vmatprep.subr.bf16.mxu0 0
      %371 = vmatpush1.bf16.msra.mxu0 0
      %372 = vmatprep.subr.bf16.mxu0 0
      %373 = vmatpush1.bf16.msra.mxu0 0
      %374 = vmatprep.subr.bf16.mxu0 0
      %375 = vmatpush1.bf16.msra.mxu0 0
      %376 = vmatprep.subr.bf16.mxu0 0
      %377 = vmatpush1.bf16.msra.mxu0 0
      %378 = vmatprep.subr.bf16.mxu0 0
      %379 = vmatpush1.bf16.msra.mxu0 0
      %380 = vmatprep.subr.bf16.mxu0 0
      %381 = vmatpush1.bf16.msra.mxu0 0
      %382 = vmatprep.subr.bf16.mxu0 0
      %383 = vmatpush1.bf16.msra.mxu0 0
      %384 = vmatprep.subr.bf16.mxu0 0
      %385 = vmatpush1.bf16.msra.mxu0 0
      %386 = vmatprep.subr.bf16.mxu0 0
      %387 = vmatpush1.bf16.msra.mxu0 0
      %388 = vmatprep.subr.bf16.mxu0 0
      %389 = vmatpush1.bf16.msra.mxu0 0
      %390 = vmatprep.mubr.bf16.mxu0 0
      %391 = vmatmul.mubr.bf16.gmra.mrb[0].mxu0 %v356
      %v392 = vpop.f32.mrb[0].mxu0
      %v393 = vadd.f32 %v349, %v392
      %v394 = vpop.f32.mrb[0].mxu0
      %v395 = vpop.f32.mrb[0].mxu0
      %v396 = vpop.f32.mrb[0].mxu0
      %397 = vdwg.mxu0
      %s398 = scalar_lea.vmem %s280, 8
      %v399 = vld [vmem:[%s398] sm:$0xf]
      %400 = vrot.lane.b32.xlu0 %v306, 119
      %v401 = vpop.permute.xlu0 %400
      %v404 = vsel %vm310, %v399, 0
      %406 = vmatprep.subr.bf16.mxu0 0
      %407 = vmatpush1.bf16.msra.mxu0 %v401
      %408 = vmatprep.subr.bf16.mxu0 0
      %409 = vmatpush1.bf16.msra.mxu0 0
      %410 = vmatprep.subr.bf16.mxu0 0
      %411 = vmatpush1.bf16.msra.mxu0 0
      %412 = vmatprep.subr.bf16.mxu0 0
      %413 = vmatpush1.bf16.msra.mxu0 0
      %414 = vmatprep.subr.bf16.mxu0 0
      %415 = vmatpush1.bf16.msra.mxu0 0
      %416 = vmatprep.subr.bf16.mxu0 0
      %417 = vmatpush1.bf16.msra.mxu0 0
      %418 = vmatprep.subr.bf16.mxu0 0
      %419 = vmatpush1.bf16.msra.mxu0 0
      %420 = vmatprep.subr.bf16.mxu0 0
      %421 = vmatpush1.bf16.msra.mxu0 0
      %422 = vmatprep.subr.bf16.mxu0 0
      %423 = vmatpush1.bf16.msra.mxu0 0
      %424 = vmatprep.subr.bf16.mxu0 0
      %425 = vmatpush1.bf16.msra.mxu0 0
      %426 = vmatprep.subr.bf16.mxu0 0
      %427 = vmatpush1.bf16.msra.mxu0 0
      %428 = vmatprep.subr.bf16.mxu0 0
      %429 = vmatpush1.bf16.msra.mxu0 0
      %430 = vmatprep.subr.bf16.mxu0 0
      %431 = vmatpush1.bf16.msra.mxu0 0
      %432 = vmatprep.subr.bf16.mxu0 0
      %433 = vmatpush1.bf16.msra.mxu0 0
      %434 = vmatprep.subr.bf16.mxu0 0
      %435 = vmatpush1.bf16.msra.mxu0 0
      %436 = vmatprep.subr.bf16.mxu0 0
      %437 = vmatpush1.bf16.msra.mxu0 0
      %438 = vmatprep.mubr.bf16.mxu0 0
      %439 = vmatmul.mubr.bf16.gmra.mrb[0].mxu0 %v404
      %v440 = vpop.f32.mrb[0].mxu0
      %v441 = vadd.f32 0.0, %v440
      %v442 = vpop.f32.mrb[0].mxu0
      %v443 = vpop.f32.mrb[0].mxu0
      %v444 = vpop.f32.mrb[0].mxu0
      %445 = vdwg.mxu0
      %v446 = vadd.f32 %v393, %v441
      %s447 = scalar_lea.vmem %s280, 12
      %v448 = vld [vmem:[%s447] sm:$0xf]
      %449 = vrot.lane.b32.xlu0 %v306, 118
      %v450 = vpop.permute.xlu0 %449
      %v453 = vsel %vm310, %v448, 0
      %455 = vmatprep.subr.bf16.mxu0 0
      %456 = vmatpush1.bf16.msra.mxu0 %v450
      %457 = vmatprep.subr.bf16.mxu0 0
      %458 = vmatpush1.bf16.msra.mxu0 0
      %459 = vmatprep.subr.bf16.mxu0 0
      %460 = vmatpush1.bf16.msra.mxu0 0
      %461 = vmatprep.subr.bf16.mxu0 0
      %462 = vmatpush1.bf16.msra.mxu0 0
      %463 = vmatprep.subr.bf16.mxu0 0
      %464 = vmatpush1.bf16.msra.mxu0 0
      %465 = vmatprep.subr.bf16.mxu0 0
      %466 = vmatpush1.bf16.msra.mxu0 0
      %467 = vmatprep.subr.bf16.mxu0 0
      %468 = vmatpush1.bf16.msra.mxu0 0
      %469 = vmatprep.subr.bf16.mxu0 0
      %470 = vmatpush1.bf16.msra.mxu0 0
      %471 = vmatprep.subr.bf16.mxu0 0
      %472 = vmatpush1.bf16.msra.mxu0 0
      %473 = vmatprep.subr.bf16.mxu0 0
      %474 = vmatpush1.bf16.msra.mxu0 0
      %475 = vmatprep.subr.bf16.mxu0 0
      %476 = vmatpush1.bf16.msra.mxu0 0
      %477 = vmatprep.subr.bf16.mxu0 0
      %478 = vmatpush1.bf16.msra.mxu0 0
      %479 = vmatprep.subr.bf16.mxu0 0
      %480 = vmatpush1.bf16.msra.mxu0 0
      %481 = vmatprep.subr.bf16.mxu0 0
      %482 = vmatpush1.bf16.msra.mxu0 0
      %483 = vmatprep.subr.bf16.mxu0 0
      %484 = vmatpush1.bf16.msra.mxu0 0
      %485 = vmatprep.subr.bf16.mxu0 0
      %486 = vmatpush1.bf16.msra.mxu0 0
      %487 = vmatprep.mubr.bf16.mxu0 0
      %488 = vmatmul.mubr.bf16.gmra.mrb[0].mxu0 %v453
      %v489 = vpop.f32.mrb[0].mxu0
      %v490 = vadd.f32 0.0, %v489
      %v491 = vpop.f32.mrb[0].mxu0
      %v492 = vpop.f32.mrb[0].mxu0
      %v493 = vpop.f32.mrb[0].mxu0
      %494 = vdwg.mxu0
      %v495 = vadd.f32 %v446, %v490
      %v496 = vld [vmem:[%s5] sm:$0x1]
      %v498 = vlaneseq
      %v499 = vshrl.u32 %v498, 7
      %v500 = vsub.s32 0, %v499
      %v501 = vrot.slane %v496, %v500
      %v503 = vmul.f32 %v495, %v501
      %vm504 = vcmask 580608
      %v505 = vsel %vm504, %v503, 0.0
      %506 = vadd.xlane.f32.xlu0 %v505
      %v507 = vpop.xlane.xlu0 %506
      %v508 = vmul.f32 %v503, %v503
      %v509 = vsel %vm504, %v508, 0.0
      %510 = vadd.xlane.f32.xlu0 %v509
      %v511 = vpop.xlane.xlu0 %510
      %v512 = vmul.f32 %v507, 0.015625
      %v513 = vmul.f32 %v511, 0.015625
      %v514 = vmul.f32 %v512, %v512
      %v515 = vsub.f32 %v513, %v514
      %v516 = vmax.f32 %v515, 0.0
      %v517 = vadd.f32 %v516, 1e-05
      %v518 = vrsqrt.pop %v517
      %v519 = vld [vmem:[%s284] sm:$0xff]
      %v520 = vmul.f32 %v519, %v518
      %v521 = vmul.f32 %v520, 2.0
      %v522 = vld [vmem:[%s288] sm:$0xff]
      %v523 = vmul.f32 %v512, %v519
      %v524 = vmul.f32 %v523, %v518
      %v525 = vsub.f32 %v522, %v524
      %v526 = vmul.f32 %v525, 2.0
      %528 = vset.pattern.permute.xlu0 0
      %529 = vperm.xlu0 %528, %v521
      %v530 = vpop.permute.xlu0 %529
      %v532 = vmul.f32 %v495, %v530
      %534 = vset.pattern.permute.xlu0 0
      %535 = vperm.xlu0 %534, %v526
      %v536 = vpop.permute.xlu0 %535
      %v538 = vadd.f32 %v532, %v536
      %v539 = vlaneseq
      %v540 = vshrl.u32 %v539, 7
      %s541 = smul.u32 %s23, 8
      %v542 = vstv %s541
      %v543 = vadd.s32 %v540, %v542
      %v544 = vlaneseq
      %v545 = vand.u32 %v544, 127
      %s546 = smul.u32 %s22, 8
      %v547 = vstv %s546
      %v548 = vadd.s32 %v547, %v543
      %v549 = vmul.u32 %v548, 71
      %v550 = vadd.s32 %v549, %v545
      %v551 = vmul.u32 %v550, 2654435769
      %s552 = sld [smem:[#allocation3]]
      %v553 = vstv %s552
      %v554 = vadd.s32 %v551, %v553
      %v555 = vshrl.u32 %v554, 16
      %v556 = vxor.u32 %v554, %v555
      %v557 = vmul.u32 %v556, 2246822507
      %v558 = vshrl.u32 %v557, 13
      %v559 = vxor.u32 %v557, %v558
      %v560 = vmul.u32 %v559, 3266489909
      %v561 = vshrl.u32 %v560, 16
      %v562 = vxor.u32 %v560, %v561
      %vm563 = vcmp.ge.s32.totalorder %v562, 0
      %v564 = vmax.f32 %v538, 0.0
      %v565 = vsel %vm563, %v564, 0.0
      %566 = vst.msk [vmem:[%s295] sm:$0xff] %vm504, %v565
      %p567 = scmp.lt.s32.totalorder %s22, 1
      %s568 = scalar_select %p567, %s22, 1
      %p569 = scmp.lt.s32.totalorder %s23, 0
      %s570 = scalar_select %p569, %s23, 0
      %s571 = sadd.s32 %s570, %s568
      %s572 = smul.addr %s571, 8
      %s573 = scalar_lea.vmem %s6, %s572
      // Predicated region
      $region41: #{conv_block_dropout.1} parent=39 // pred_check
        %p574 = pneg %p175
      $region42: #{conv_block_dropout.1} parent=39 // pred_check_branch
        %576 = sbr.rel (%p574) target = $region44
      $region43: #{conv_block_dropout.1} parent=39 // pred_region
        _
      $region44: #{conv_block_dropout.1} parent=39 // pred_fallthru
        _
    $region40: #{conv_block_dropout.1} parent=5 // pred_fallthru
      _
    %p577 = scmp.le.s32.totalorder 2, %s13
    // Predicated region
    $region45: #{conv_block_dropout.1} parent=5 // pred_check
      %p578 = pneg %p577
    $region46: #{conv_block_dropout.1} parent=5 // pred_check_branch
      %580 = sbr.rel (%p578) target = $region48
    $region47: #{conv_block_dropout.1} parent=5 // pred_region
      %s581 = ssub.s32 %s13, 2
      // Predicated region
      $region49: #{conv_block_dropout.1} parent=47 // pred_check
        %p582 = pneg %p181
      $region50: #{conv_block_dropout.1} parent=47 // pred_check_branch
        %584 = sbr.rel (%p582) target = $region52
      $region51: #{conv_block_dropout.1} parent=47 // pred_region
        %p585 = scmp.lt.s32.totalorder %s24, 1
        %s586 = scalar_select %p585, %s24, 1
        %p587 = scmp.lt.s32.totalorder %s25, 0
        %s588 = scalar_select %p587, %s25, 0
        %s589 = sadd.s32 %s588, %s586
        %s590 = smul.addr %s589, 8
        %s591 = scalar_lea.vmem %s6, %s590
      $region52: #{conv_block_dropout.1} parent=47 // pred_fallthru
        _
    $region48: #{conv_block_dropout.1} parent=5 // pred_fallthru
      _
  $region6: #{conv_block_dropout.1} parent=0 // loop_footer
    %s17 = sadd.s32 1, %s13
  $region7: #{conv_block_dropout.1} parent=0 // loop_footer_branch
    %12 = sbr.rel target = $region3
  $region8: #{conv_block_dropout.1} parent=0 // loop_exit
    _

</llo_original>
